<compile_context>
chip_gen: v5e
topology: v5e:2x2
jax: 0.10.0
libtpu: 0.0.40
codegen_flags: <defaults>
</compile_context>

<pallas_src>
import jax
import jax.numpy as jnp
from jax import lax
from jax.experimental import pallas as pl
from jax.experimental.pallas import tpu as pltpu

N_GRAPHEME = 168
N_VOWEL = 11
N_CONSONANT = 7
N_CLASS = N_GRAPHEME + N_VOWEL + N_CONSONANT  # 186

LANE = 128
TK_DEFAULT = 2048     # rows of W per grid step (multiple of 128)


def _classifier_kernel(x_ref, w_ref, b_ref, y_ref,
                       logits_ref, nll_ref, correct_ref):
    """K-streamed linear classifier + fused cross-entropy / accuracy epilogue.

    Grid: (k_tiles,) over the contraction dimension.  All outputs keep a constant
    block index over K, so they stay VMEM-resident; logits_ref doubles as the
    f32 accumulator (no scratch buffer needed).
    """
    k = pl.program_id(0)

    # ----- init accumulator (the logits output itself) on first K step -----
    @pl.when(k == 0)
    def _():
        logits_ref[...] = jnp.zeros_like(logits_ref)

    # ----- streamed matmul: bf16 operands, f32 accumulation on the MXU -----
    logits_ref[...] += jnp.dot(x_ref[...], w_ref[...],
                               preferred_element_type=jnp.float32)

    # ----- finalize on last K step: bias, softmax-CE, accuracy -----
    @pl.when(k == pl.num_programs(0) - 1)
    def _():
        logits = logits_ref[...] + b_ref[...]                # [B, N_CLASS] f32
        logits_ref[...] = logits

        # numerically stable cross entropy, per-sample (mean taken in wrapper)
        m = jnp.max(logits, axis=-1, keepdims=True)                      # [B,1]
        lse = jnp.log(jnp.sum(jnp.exp(logits - m), axis=-1,
                              keepdims=True)) + m                        # [B,1]
        y = y_ref[...]                                                   # [B,1] int32
        class_ids = lax.broadcasted_iota(jnp.int32, logits.shape, 1)     # [B,NC]
        true_logit = jnp.sum(jnp.where(class_ids == y, logits, 0.0),
                             axis=-1, keepdims=True)                     # [B,1]
        nll_ref[...] = lse - true_logit

        # accuracy via true argmax (first max index), matching torch/jnp argmax
        first_max = jnp.min(jnp.where(logits >= m, class_ids, N_CLASS),
                            axis=-1, keepdims=True)                      # [B,1]
        correct_ref[...] = (first_max == y).astype(jnp.float32)


def prepare_linear_predictor(W, b, tk=TK_DEFAULT):
    """One-time weight prep, hoisted out of the per-call forward.

    Pads the contraction dim to a multiple of the K tile and casts to bf16.
    The class dim is NOT padded: W stays [d_pad, 186] in HBM (dominant stream).
    """
    D = W.shape[0]
    d_round = ((D + LANE - 1) // LANE) * LANE
    tk = min(tk, d_round)
    k_tiles = (d_round + tk - 1) // tk
    d_pad = k_tiles * tk

    W_bf = jnp.zeros((d_pad, N_CLASS), jnp.bfloat16).at[:D, :].set(
        W.astype(jnp.bfloat16))
    b2 = b.reshape(1, N_CLASS).astype(jnp.float32)
    return dict(W_bf=W_bf, b2=b2, D=D, d_pad=d_pad, tk=tk, k_tiles=k_tiles)


def bengali_classifier_forward(x, y, params):
    """x: [B,C,H,W] f32 (NCHW), y: [B] int, params from prepare_linear_predictor.
    Returns (loss, metrics, preds) like the PyTorch module's forward."""
    W_bf, b2 = params["W_bf"], params["b2"]
    D, d_pad = params["D"], params["d_pad"]
    tk, k_tiles = params["tk"], params["k_tiles"]

    B = x.shape[0]
    x_flat = x.reshape(B, -1)
    assert x_flat.shape[1] == D, "input feature size does not match predictor"

    # per-call activation prep (cheap: B rows << W's D rows)
    x_bf = jnp.zeros((B, d_pad), jnp.bfloat16).at[:, :D].set(
        x_flat.astype(jnp.bfloat16))
    y2 = y.astype(jnp.int32).reshape(B, 1)

    logits, nll, correct = pl.pallas_call(
        _classifier_kernel,
        out_shape=(
            jax.ShapeDtypeStruct((B, N_CLASS), jnp.float32),  # logits / preds
            jax.ShapeDtypeStruct((B, 1), jnp.float32),        # per-sample nll
            jax.ShapeDtypeStruct((B, 1), jnp.float32),        # per-sample correct
        ),
        grid=(k_tiles,),
        in_specs=[
            pl.BlockSpec((B, tk), lambda k: (0, k)),         # x slab, streamed over K
            pl.BlockSpec((tk, N_CLASS), lambda k: (k, 0)),   # W slab (full 186-wide rows)
            pl.BlockSpec((1, N_CLASS), lambda k: (0, 0)),    # bias (resident)
            pl.BlockSpec((B, 1), lambda k: (0, 0)),          # labels (resident)
        ],
        out_specs=(
            pl.BlockSpec((B, N_CLASS), lambda k: (0, 0)),    # logits == accumulator
            pl.BlockSpec((B, 1), lambda k: (0, 0)),
            pl.BlockSpec((B, 1), lambda k: (0, 0)),
        ),
        compiler_params=pltpu.CompilerParams(
            dimension_semantics=("arbitrary",),              # K is a reduction axis
            vmem_limit_bytes=32 * 1024 * 1024,
        ),
    )(x_bf, W_bf, b2, y2)

    loss = jnp.mean(nll)
    acc = jnp.mean(correct)
    metrics = {"loss": loss, "acc": acc}
    return loss, metrics, logits


if __name__ == "__main__":
    key = jax.random.PRNGKey(0)
    kx, kw, kb, ky = jax.random.split(key, 4)

    # small shapes consistent with an NCHW image classifier input
    B, C, H, Wd = 2, 4, 16, 16
    D = C * H * Wd

    x = jax.random.normal(kx, (B, C, H, Wd), dtype=jnp.float32)
    y = jax.random.randint(ky, (B,), 0, N_CLASS, dtype=jnp.int32)

    # deterministic predictor parameters (linear classifier)
    W = jax.random.normal(kw, (D, N_CLASS), dtype=jnp.float32) * 0.02
    b = jax.random.normal(kb, (N_CLASS,), dtype=jnp.float32) * 0.01

    params = prepare_linear_predictor(W, b)          # one-time weight prep
    loss, metrics, preds = bengali_classifier_forward(x, y, params)
    jax.block_until_ready((loss, metrics, preds))

    # reference check in plain JAX, with the same bf16-rounded operands
    xb = x.reshape(B, D).astype(jnp.bfloat16).astype(jnp.float32)
    Wb = W.astype(jnp.bfloat16).astype(jnp.float32)
    logits_ref = jnp.dot(xb, Wb, precision=lax.Precision.HIGHEST) + b
    lse = jax.nn.logsumexp(logits_ref, axis=-1)
    loss_ref = jnp.mean(lse - logits_ref[jnp.arange(B), y])
    acc_ref = jnp.mean((jnp.argmax(logits_ref, axis=-1) == y).astype(jnp.float32))

    assert jnp.allclose(preds, logits_ref, atol=1e-3, rtol=1e-3)
    assert jnp.allclose(loss, loss_ref, atol=1e-3, rtol=1e-3)
    assert jnp.allclose(metrics["acc"], acc_ref, atol=1e-6)

    print("KERNEL_OK")
</pallas_src>

<mosaic_0001>
module attributes {stable_mosaic.version = 11 : i64} {
  func.func @_classifier_kernel(%arg0: i32, %arg1: memref<2x1024xbf16, #tpu.memory_space<vmem>>, %arg2: memref<1024x186xbf16, #tpu.memory_space<vmem>>, %arg3: memref<1x186xf32, #tpu.memory_space<vmem>>, %arg4: memref<2x1xi32, #tpu.memory_space<vmem>>, %arg5: memref<2x186xf32, #tpu.memory_space<vmem>>, %arg6: memref<2x1xf32, #tpu.memory_space<vmem>>, %arg7: memref<2x1xf32, #tpu.memory_space<vmem>>) attributes {dimension_semantics = [#tpu.dimension_semantics<arbitrary>], iteration_bounds = array<i64: 1>, scalar_prefetch = 0 : i64, scratch_operands = 0 : i64, tpu.core_type = #tpu.core_type<tc>, window_params = [{transform_indices = @transform_0, window_bounds = array<i64: 2, 1024>}, {transform_indices = @transform_1, window_bounds = array<i64: 1024, 186>}, {pipeline_mode = #tpu.pipeline_mode<synchronous>, transform_indices = @transform_2, window_bounds = array<i64: 1, 186>}, {pipeline_mode = #tpu.pipeline_mode<synchronous>, transform_indices = @transform_3, window_bounds = array<i64: 2, 1>}, {pipeline_mode = #tpu.pipeline_mode<synchronous>, transform_indices = @transform_4, window_bounds = array<i64: 2, 186>}, {pipeline_mode = #tpu.pipeline_mode<synchronous>, transform_indices = @transform_5, window_bounds = array<i64: 2, 1>}, {pipeline_mode = #tpu.pipeline_mode<synchronous>, transform_indices = @transform_6, window_bounds = array<i64: 2, 1>}]} {
    %c0_i32 = arith.constant 0 : i32
    %0 = arith.cmpi eq, %arg0, %c0_i32 : i32
    %1 = arith.extui %0 : i1 to i32
    %c0_i32_0 = arith.constant 0 : i32
    %2 = arith.cmpi ne, %1, %c0_i32_0 : i32
    scf.if %2 {
      %cst_10 = arith.constant 0.000000e+00 : f32
      %12 = vector.broadcast %cst_10 : f32 to vector<2x186xf32>
      %c0_11 = arith.constant 0 : index
      %c0_12 = arith.constant 0 : index
      %13 = vector.load %arg5[%c0_11, %c0_12] : memref<2x186xf32, #tpu.memory_space<vmem>>, vector<2x186xf32>
      tpu.vector_store %arg5[%c0_11, %c0_12], %12 {strides = array<i32>} : memref<2x186xf32, #tpu.memory_space<vmem>>, vector<2x186xf32>,
    } else {
    }
    %c0 = arith.constant 0 : index
    %c0_1 = arith.constant 0 : index
    %3 = vector.load %arg5[%c0, %c0_1] : memref<2x186xf32, #tpu.memory_space<vmem>>, vector<2x186xf32>
    %c0_2 = arith.constant 0 : index
    %c0_3 = arith.constant 0 : index
    %4 = vector.load %arg1[%c0_2, %c0_3] : memref<2x1024xbf16, #tpu.memory_space<vmem>>, vector<2x1024xbf16>
    %c0_4 = arith.constant 0 : index
    %c0_5 = arith.constant 0 : index
    %5 = vector.load %arg2[%c0_4, %c0_5] : memref<1024x186xbf16, #tpu.memory_space<vmem>>, vector<1024x186xbf16>
    %cst = arith.constant dense<0.000000e+00> : vector<2x186xf32>
    %6 = tpu.matmul %4, %5, %cst {dimension_numbers = #tpu.dot_dimension_numbers<[1], [0], [0], [1], [0, 0, 1, 1], [], []>} : vector<2x1024xbf16>, vector<1024x186xbf16>, vector<2x186xf32> -> vector<2x186xf32>
    %7 = arith.addf %3, %6 : vector<2x186xf32>
    %c0_6 = arith.constant 0 : index
    %c0_7 = arith.constant 0 : index
    %8 = vector.load %arg5[%c0_6, %c0_7] : memref<2x186xf32, #tpu.memory_space<vmem>>, vector<2x186xf32>
    tpu.vector_store %arg5[%c0_6, %c0_7], %7 {strides = array<i32>} : memref<2x186xf32, #tpu.memory_space<vmem>>, vector<2x186xf32>,
    %c0_i32_8 = arith.constant 0 : i32
    %9 = arith.cmpi eq, %arg0, %c0_i32_8 : i32
    %10 = arith.extui %9 : i1 to i32
    %c0_i32_9 = arith.constant 0 : i32
    %11 = arith.cmpi ne, %10, %c0_i32_9 : i32
    scf.if %11 {
      %c0_10 = arith.constant 0 : index
      %c0_11 = arith.constant 0 : index
      %12 = vector.load %arg5[%c0_10, %c0_11] : memref<2x186xf32, #tpu.memory_space<vmem>>, vector<2x186xf32>
      %c0_12 = arith.constant 0 : index
      %c0_13 = arith.constant 0 : index
      %13 = vector.load %arg3[%c0_12, %c0_13] : memref<1x186xf32, #tpu.memory_space<vmem>>, vector<1x186xf32>
      %14 = vector.broadcast %13 : vector<1x186xf32> to vector<2x186xf32>
      %15 = arith.addf %12, %14 : vector<2x186xf32>
      %c0_14 = arith.constant 0 : index
      %c0_15 = arith.constant 0 : index
      %16 = vector.load %arg5[%c0_14, %c0_15] : memref<2x186xf32, #tpu.memory_space<vmem>>, vector<2x186xf32>
      tpu.vector_store %arg5[%c0_14, %c0_15], %15 {strides = array<i32>} : memref<2x186xf32, #tpu.memory_space<vmem>>, vector<2x186xf32>,
      %cst_16 = arith.constant dense<0xFF800000> : vector<2xf32>
      %17 = vector.multi_reduction <maximumf>, %15, %cst_16 [1] : vector<2x186xf32> to vector<2xf32>
      %18 = vector.shape_cast %17 : vector<2xf32> to vector<2x1xf32>
      %19 = vector.broadcast %18 : vector<2x1xf32> to vector<2x186xf32>
      %20 = arith.subf %15, %19 : vector<2x186xf32>
      %21 = math.exp %20 : vector<2x186xf32>
      %cst_17 = arith.constant dense<0.000000e+00> : vector<2xf32>
      %22 = vector.multi_reduction <add>, %21, %cst_17 [1] : vector<2x186xf32> to vector<2xf32>
      %23 = vector.shape_cast %22 : vector<2xf32> to vector<2x1xf32>
      %24 = math.log %23 : vector<2x1xf32>
      %25 = arith.addf %24, %18 : vector<2x1xf32>
      %c0_18 = arith.constant 0 : index
      %c0_19 = arith.constant 0 : index
      %26 = vector.load %arg4[%c0_18, %c0_19] : memref<2x1xi32, #tpu.memory_space<vmem>>, vector<2x1xi32>
      %27 = tpu.iota {dimensions = array<i32: 1>} : vector<2x186xi32>
      %28 = vector.broadcast %26 : vector<2x1xi32> to vector<2x186xi32>
      %29 = arith.cmpi eq, %27, %28 : vector<2x186xi32>
      %cst_20 = arith.constant 0.000000e+00 : f32
      %30 = vector.broadcast %cst_20 : f32 to vector<2x186xf32>
      %31 = arith.select %29, %15, %30 : vector<2x186xi1>, vector<2x186xf32>
      %cst_21 = arith.constant dense<0.000000e+00> : vector<2xf32>
      %32 = vector.multi_reduction <add>, %31, %cst_21 [1] : vector<2x186xf32> to vector<2xf32>
      %33 = vector.shape_cast %32 : vector<2xf32> to vector<2x1xf32>
      %34 = arith.subf %25, %33 : vector<2x1xf32>
      %c0_22 = arith.constant 0 : index
      %c0_23 = arith.constant 0 : index
      %35 = vector.load %arg6[%c0_22, %c0_23] : memref<2x1xf32, #tpu.memory_space<vmem>>, vector<2x1xf32>
      tpu.vector_store %arg6[%c0_22, %c0_23], %34 {strides = array<i32>} : memref<2x1xf32, #tpu.memory_space<vmem>>, vector<2x1xf32>,
      %36 = vector.broadcast %18 : vector<2x1xf32> to vector<2x186xf32>
      %37 = arith.cmpf oge, %15, %36 : vector<2x186xf32>
      %c186_i32 = arith.constant 186 : i32
      %38 = vector.broadcast %c186_i32 : i32 to vector<2x186xi32>
      %39 = arith.select %37, %27, %38 : vector<2x186xi1>, vector<2x186xi32>
      %cst_24 = arith.constant dense<2147483647> : vector<2xi32>
      %40 = vector.multi_reduction <minsi>, %39, %cst_24 [1] : vector<2x186xi32> to vector<2xi32>
      %41 = vector.shape_cast %40 : vector<2xi32> to vector<2x1xi32>
      %42 = arith.cmpi eq, %41, %26 : vector<2x1xi32>
      %43 = arith.extui %42 : vector<2x1xi1> to vector<2x1xi32>
      %44 = arith.sitofp %43 : vector<2x1xi32> to vector<2x1xf32>
      %c0_25 = arith.constant 0 : index
      %c0_26 = arith.constant 0 : index
      %45 = vector.load %arg7[%c0_25, %c0_26] : memref<2x1xf32, #tpu.memory_space<vmem>>, vector<2x1xf32>
      tpu.vector_store %arg7[%c0_25, %c0_26], %44 {strides = array<i32>} : memref<2x1xf32, #tpu.memory_space<vmem>>, vector<2x1xf32>,
    } else {
    }
    return
  }
  func.func @transform_0(%arg0: i32) -> (i32, i32) {
    %c0_i32 = arith.constant 0 : i32
    %c0_i32_0 = arith.constant 0 : i32
    return %c0_i32, %arg0 : i32, i32
  }
  func.func @transform_1(%arg0: i32) -> (i32, i32) {
    %c0_i32 = arith.constant 0 : i32
    %c0_i32_0 = arith.constant 0 : i32
    return %arg0, %c0_i32 : i32, i32
  }
  func.func @transform_2(%arg0: i32) -> (i32, i32) {
    %c0_i32 = arith.constant 0 : i32
    %c0_i32_0 = arith.constant 0 : i32
    %c0_i32_1 = arith.constant 0 : i32
    return %c0_i32, %c0_i32_0 : i32, i32
  }
  func.func @transform_3(%arg0: i32) -> (i32, i32) {
    %c0_i32 = arith.constant 0 : i32
    %c0_i32_0 = arith.constant 0 : i32
    %c0_i32_1 = arith.constant 0 : i32
    return %c0_i32, %c0_i32_0 : i32, i32
  }
  func.func @transform_4(%arg0: i32) -> (i32, i32) {
    %c0_i32 = arith.constant 0 : i32
    %c0_i32_0 = arith.constant 0 : i32
    %c0_i32_1 = arith.constant 0 : i32
    return %c0_i32, %c0_i32_0 : i32, i32
  }
  func.func @transform_5(%arg0: i32) -> (i32, i32) {
    %c0_i32 = arith.constant 0 : i32
    %c0_i32_0 = arith.constant 0 : i32
    %c0_i32_1 = arith.constant 0 : i32
    return %c0_i32, %c0_i32_0 : i32, i32
  }
  func.func @transform_6(%arg0: i32) -> (i32, i32) {
    %c0_i32 = arith.constant 0 : i32
    %c0_i32_0 = arith.constant 0 : i32
    %c0_i32_1 = arith.constant 0 : i32
    return %c0_i32, %c0_i32_0 : i32, i32
  }
}

</mosaic_0001>

<llo_original>
// kernel: tpu_custom_call.1
$region0: #{tpu_custom_call.1}
  #allocation0 [shape = 'u32[]', space=smem, size = 0x4, offset = 0x4, fixed_abs, tag = 'smem constant byte address 0x4 - core index']
  #allocation1 [shape = 'u32[72,128]{1,0:T(1,128)}', space=vmem, size = 0x9000, scoped, tag = 'internal scratch']
  %s0 = inlined_call_operand.vmem [shape: bf16[2,1024], index: 0, kind: input, shape index: {}]
  %s1 = inlined_call_operand.vmem [shape: bf16[1024,186], index: 1, kind: input, shape index: {}]
  %s2 = inlined_call_operand.vmem [shape: f32[1,186], index: 2, kind: input, shape index: {}]
  %s3 = inlined_call_operand.vmem [shape: s32[2,1], index: 3, kind: input, shape index: {}]
  %s4 = inlined_call_operand.hbm [shape: f32[2,186], index: 4, kind: output, shape index: {0}]
  %s5 = inlined_call_operand.vmem [shape: f32[2,1], index: 5, kind: output, shape index: {1}]
  %s6 = inlined_call_operand.vmem [shape: f32[2,1], index: 6, kind: output, shape index: {2}]
  %7 = xla_tuple %s4, %s5, %s6
  %s8 = sld [smem:[#allocation0]]
  $region50: #{tpu_custom_call.1} parent=0
    _
  %s10 = ssub.s32 1, %s8
  %s11 = scalar_select 0, %s10, %s8
  $region1: #{tpu_custom_call.1} parent=0
    #allocation2 [shape = 'u8[2048]{0}', space=vmem, size = 0x800, scoped, tag = 'output window, operand 0, single buffered']
    #allocation3 [shape = 's32[1]{0}', space=sflag, size = 0x4, scoped, tag = 'scoped memory for tpu_custom_call.1']
    %12 = vsyncpa [#allocation3], 0
    // Predicated region
    $region2: #{tpu_custom_call.1} parent=1 // pred_check
      _
    $region3: #{tpu_custom_call.1} parent=1 // pred_check_branch
      %14 = sbr.rel (0) target = $region5
    $region4: #{tpu_custom_call.1} parent=1 // pred_region
      _
    $region5: #{tpu_custom_call.1} parent=1 // pred_fallthru
      _
    // Predicated region
    $region6: #{tpu_custom_call.1} parent=1 // pred_check
      _
    $region7: #{tpu_custom_call.1} parent=1 // pred_check_branch
      %16 = sbr.rel (0) target = $region9
    $region8: #{tpu_custom_call.1} parent=1 // pred_region
      _
    $region9: #{tpu_custom_call.1} parent=1 // pred_fallthru
      _
    // Predicated region
    $region10: #{tpu_custom_call.1} parent=1 // pred_check
      _
    $region11: #{tpu_custom_call.1} parent=1 // pred_check_branch
      %18 = sbr.rel (0) target = $region13
    $region12: #{tpu_custom_call.1} parent=1 // pred_region
      _
    $region13: #{tpu_custom_call.1} parent=1 // pred_fallthru
      _
    // Predicated region
    $region14: #{tpu_custom_call.1} parent=1 // pred_check
      _
    $region15: #{tpu_custom_call.1} parent=1 // pred_check_branch
      %20 = sbr.rel (0) target = $region17
    $region16: #{tpu_custom_call.1} parent=1 // pred_region
      _
    $region17: #{tpu_custom_call.1} parent=1 // pred_fallthru
      _
    %p21 = scmp.eq.s32.totalorder 0, 0
    // Predicated region
    $region18: #{tpu_custom_call.1} parent=1 // pred_check
      %p22 = pneg %p21
    $region19: #{tpu_custom_call.1} parent=1 // pred_check_branch
      %24 = sbr.rel (%p22) target = $region21
    $region20: #{tpu_custom_call.1} parent=1 // pred_region
      %vm25 = vcmask 1041408
      %vm26 = vcmask 470018
      %vm27 = vmor %vm26, %vm25
      %28 = vst.msk [vmem:[#allocation2] sm:$0xf] %vm27, 0.0
    $region21: #{tpu_custom_call.1} parent=1 // pred_fallthru
      _
    %v29 = vld [vmem:[#allocation2] sm:$0xf]
    %v30 = vld [vmem:[%s0] sm:$0xff]
    %v31 = vld [vmem:[%s1] sm:$0xff]
    %v32 = vld [vmem:[%s1 + $0x8] sm:$0xff]
    %v33 = vld [vmem:[%s1 + $0x10] sm:$0xff]
    %v34 = vld [vmem:[%s1 + $0x18] sm:$0xff]
    %v35 = vld [vmem:[%s1 + $0x20] sm:$0xff]
    %v36 = vld [vmem:[%s1 + $0x28] sm:$0xff]
    %v37 = vld [vmem:[%s1 + $0x30] sm:$0xff]
    %v38 = vld [vmem:[%s1 + $0x38] sm:$0xff]
    %v39 = vld [vmem:[%s1 + $0x40] sm:$0xff]
    %v40 = vld [vmem:[%s1 + $0x48] sm:$0xff]
    %v41 = vld [vmem:[%s1 + $0x50] sm:$0xff]
    %v42 = vld [vmem:[%s1 + $0x58] sm:$0xff]
    %v43 = vld [vmem:[%s1 + $0x60] sm:$0xff]
    %v44 = vld [vmem:[%s1 + $0x68] sm:$0xff]
    %v45 = vld [vmem:[%s1 + $0x70] sm:$0xff]
    %v46 = vld [vmem:[%s1 + $0x78] sm:$0xff]
    %v47 = vld [vmem:[%s1 + $0x80] sm:$0xff]
    %v48 = vld [vmem:[%s1 + $0x88] sm:$0xff]
    %v49 = vld [vmem:[%s1 + $0x90] sm:$0xff]
    %v50 = vld [vmem:[%s1 + $0x98] sm:$0xff]
    %v51 = vld [vmem:[%s1 + $0xa0] sm:$0xff]
    %v52 = vld [vmem:[%s1 + $0xa8] sm:$0xff]
    %v53 = vld [vmem:[%s1 + $0xb0] sm:$0xff]
    %v54 = vld [vmem:[%s1 + $0xb8] sm:$0xff]
    %v55 = vld [vmem:[%s1 + $0xc0] sm:$0xff]
    %v56 = vld [vmem:[%s1 + $0xc8] sm:$0xff]
    %v57 = vld [vmem:[%s1 + $0xd0] sm:$0xff]
    %v58 = vld [vmem:[%s1 + $0xd8] sm:$0xff]
    %v59 = vld [vmem:[%s1 + $0xe0] sm:$0xff]
    %v60 = vld [vmem:[%s1 + $0xe8] sm:$0xff]
    %v61 = vld [vmem:[%s1 + $0xf0] sm:$0xff]
    %v62 = vld [vmem:[%s1 + $0xf8] sm:$0xff]
    %v63 = vld [vmem:[%s1 + $0x100] sm:$0xff]
    %v64 = vld [vmem:[%s1 + $0x108] sm:$0xff]
    %v65 = vld [vmem:[%s1 + $0x110] sm:$0xff]
    %v66 = vld [vmem:[%s1 + $0x118] sm:$0xff]
    %v67 = vld [vmem:[%s1 + $0x120] sm:$0xff]
    %v68 = vld [vmem:[%s1 + $0x128] sm:$0xff]
    %v69 = vld [vmem:[%s1 + $0x130] sm:$0xff]
    %v70 = vld [vmem:[%s1 + $0x138] sm:$0xff]
    %v71 = vld [vmem:[%s1 + $0x140] sm:$0xff]
    %v72 = vld [vmem:[%s1 + $0x148] sm:$0xff]
    %v73 = vld [vmem:[%s1 + $0x150] sm:$0xff]
    %v74 = vld [vmem:[%s1 + $0x158] sm:$0xff]
    %v75 = vld [vmem:[%s1 + $0x160] sm:$0xff]
    %v76 = vld [vmem:[%s1 + $0x168] sm:$0xff]
    %v77 = vld [vmem:[%s1 + $0x170] sm:$0xff]
    %v78 = vld [vmem:[%s1 + $0x178] sm:$0xff]
    %v79 = vld [vmem:[%s1 + $0x180] sm:$0xff]
    %v80 = vld [vmem:[%s1 + $0x188] sm:$0xff]
    %v81 = vld [vmem:[%s1 + $0x190] sm:$0xff]
    %v82 = vld [vmem:[%s1 + $0x198] sm:$0xff]
    %v83 = vld [vmem:[%s1 + $0x1a0] sm:$0xff]
    %v84 = vld [vmem:[%s1 + $0x1a8] sm:$0xff]
    %v85 = vld [vmem:[%s1 + $0x1b0] sm:$0xff]
    %v86 = vld [vmem:[%s1 + $0x1b8] sm:$0xff]
    %v87 = vld [vmem:[%s1 + $0x1c0] sm:$0xff]
    %v88 = vld [vmem:[%s1 + $0x1c8] sm:$0xff]
    %v89 = vld [vmem:[%s1 + $0x1d0] sm:$0xff]
    %v90 = vld [vmem:[%s1 + $0x1d8] sm:$0xff]
    %v91 = vld [vmem:[%s1 + $0x1e0] sm:$0xff]
    %v92 = vld [vmem:[%s1 + $0x1e8] sm:$0xff]
    %v93 = vld [vmem:[%s1 + $0x1f0] sm:$0xff]
    %v94 = vld [vmem:[%s1 + $0x1f8] sm:$0xff]
    %v95 = vld [vmem:[%s1 + $0x200] sm:$0xff]
    %v96 = vld [vmem:[%s1 + $0x208] sm:$0xff]
    %v97 = vld [vmem:[%s1 + $0x210] sm:$0xff]
    %v98 = vld [vmem:[%s1 + $0x218] sm:$0xff]
    %v99 = vld [vmem:[%s1 + $0x220] sm:$0xff]
    %v100 = vld [vmem:[%s1 + $0x228] sm:$0xff]
    %v101 = vld [vmem:[%s1 + $0x230] sm:$0xff]
    %v102 = vld [vmem:[%s1 + $0x238] sm:$0xff]
    %v103 = vld [vmem:[%s1 + $0x240] sm:$0xff]
    %v104 = vld [vmem:[%s1 + $0x248] sm:$0xff]
    %v105 = vld [vmem:[%s1 + $0x250] sm:$0xff]
    %v106 = vld [vmem:[%s1 + $0x258] sm:$0xff]
    %v107 = vld [vmem:[%s1 + $0x260] sm:$0xff]
    %v108 = vld [vmem:[%s1 + $0x268] sm:$0xff]
    %v109 = vld [vmem:[%s1 + $0x270] sm:$0xff]
    %v110 = vld [vmem:[%s1 + $0x278] sm:$0xff]
    %v111 = vld [vmem:[%s1 + $0x280] sm:$0xff]
    %v112 = vld [vmem:[%s1 + $0x288] sm:$0xff]
    %v113 = vld [vmem:[%s1 + $0x290] sm:$0xff]
    %v114 = vld [vmem:[%s1 + $0x298] sm:$0xff]
    %v115 = vld [vmem:[%s1 + $0x2a0] sm:$0xff]
    %v116 = vld [vmem:[%s1 + $0x2a8] sm:$0xff]
    %v117 = vld [vmem:[%s1 + $0x2b0] sm:$0xff]
    %v118 = vld [vmem:[%s1 + $0x2b8] sm:$0xff]
    %v119 = vld [vmem:[%s1 + $0x2c0] sm:$0xff]
    %v120 = vld [vmem:[%s1 + $0x2c8] sm:$0xff]
    %v121 = vld [vmem:[%s1 + $0x2d0] sm:$0xff]
    %v122 = vld [vmem:[%s1 + $0x2d8] sm:$0xff]
    %v123 = vld [vmem:[%s1 + $0x2e0] sm:$0xff]
    %v124 = vld [vmem:[%s1 + $0x2e8] sm:$0xff]
    %v125 = vld [vmem:[%s1 + $0x2f0] sm:$0xff]
    %v126 = vld [vmem:[%s1 + $0x2f8] sm:$0xff]
    %v127 = vld [vmem:[%s1 + $0x300] sm:$0xff]
    %v128 = vld [vmem:[%s1 + $0x308] sm:$0xff]
    %v129 = vld [vmem:[%s1 + $0x310] sm:$0xff]
    %v130 = vld [vmem:[%s1 + $0x318] sm:$0xff]
    %v131 = vld [vmem:[%s1 + $0x320] sm:$0xff]
    %v132 = vld [vmem:[%s1 + $0x328] sm:$0xff]
    %v133 = vld [vmem:[%s1 + $0x330] sm:$0xff]
    %v134 = vld [vmem:[%s1 + $0x338] sm:$0xff]
    %v135 = vld [vmem:[%s1 + $0x340] sm:$0xff]
    %v136 = vld [vmem:[%s1 + $0x348] sm:$0xff]
    %v137 = vld [vmem:[%s1 + $0x350] sm:$0xff]
    %v138 = vld [vmem:[%s1 + $0x358] sm:$0xff]
    %v139 = vld [vmem:[%s1 + $0x360] sm:$0xff]
    %v140 = vld [vmem:[%s1 + $0x368] sm:$0xff]
    %v141 = vld [vmem:[%s1 + $0x370] sm:$0xff]
    %v142 = vld [vmem:[%s1 + $0x378] sm:$0xff]
    %v143 = vld [vmem:[%s1 + $0x380] sm:$0xff]
    %v144 = vld [vmem:[%s1 + $0x388] sm:$0xff]
    %v145 = vld [vmem:[%s1 + $0x390] sm:$0xff]
    %v146 = vld [vmem:[%s1 + $0x398] sm:$0xff]
    %v147 = vld [vmem:[%s1 + $0x3a0] sm:$0xff]
    %v148 = vld [vmem:[%s1 + $0x3a8] sm:$0xff]
    %v149 = vld [vmem:[%s1 + $0x3b0] sm:$0xff]
    %v150 = vld [vmem:[%s1 + $0x3b8] sm:$0xff]
    %v151 = vld [vmem:[%s1 + $0x3c0] sm:$0xff]
    %v152 = vld [vmem:[%s1 + $0x3c8] sm:$0xff]
    %v153 = vld [vmem:[%s1 + $0x3d0] sm:$0xff]
    %v154 = vld [vmem:[%s1 + $0x3d8] sm:$0xff]
    %v155 = vld [vmem:[%s1 + $0x3e0] sm:$0xff]
    %v156 = vld [vmem:[%s1 + $0x3e8] sm:$0xff]
    %v157 = vld [vmem:[%s1 + $0x3f0] sm:$0xff]
    %v158 = vld [vmem:[%s1 + $0x3f8] sm:$0xff]
    %160 = vst [vmem:[#allocation1] ss:$9 sm:$0xff] %v30
    %v161 = vld [vmem:[#allocation1] sm:$0xff]
    %v162 = vld [vmem:[#allocation1 + $0x9] sm:$0xff]
    %v163 = vld [vmem:[#allocation1 + $0x12] sm:$0xff]
    %v164 = vld [vmem:[#allocation1 + $0x1b] sm:$0xff]
    %v165 = vld [vmem:[#allocation1 + $0x24] sm:$0xff]
    %v166 = vld [vmem:[#allocation1 + $0x2d] sm:$0xff]
    %v167 = vld [vmem:[#allocation1 + $0x36] sm:$0xff]
    %v168 = vld [vmem:[#allocation1 + $0x3f] sm:$0xff]
    %v305 = vunpack.c.l.b16 %v31
    %v306 = vunpack.c.h.b16 %v31
    %v307 = vunpack.c.l.b16 %v32
    %v308 = vunpack.c.h.b16 %v32
    %v309 = vunpack.c.l.b16 %v33
    %v310 = vunpack.c.h.b16 %v33
    %v311 = vunpack.c.l.b16 %v34
    %v312 = vunpack.c.h.b16 %v34
    %v313 = vunpack.c.l.b16 %v35
    %v314 = vunpack.c.h.b16 %v35
    %v315 = vunpack.c.l.b16 %v36
    %v316 = vunpack.c.h.b16 %v36
    %v317 = vunpack.c.l.b16 %v37
    %v318 = vunpack.c.h.b16 %v37
    %v319 = vunpack.c.l.b16 %v38
    %v320 = vunpack.c.h.b16 %v38
    %v321 = vunpack.c.l.b16 %v39
    %v322 = vunpack.c.h.b16 %v39
    %v323 = vunpack.c.l.b16 %v40
    %v324 = vunpack.c.h.b16 %v40
    %v325 = vunpack.c.l.b16 %v41
    %v326 = vunpack.c.h.b16 %v41
    %v327 = vunpack.c.l.b16 %v42
    %v328 = vunpack.c.h.b16 %v42
    %v329 = vunpack.c.l.b16 %v43
    %v330 = vunpack.c.h.b16 %v43
    %v331 = vunpack.c.l.b16 %v44
    %v332 = vunpack.c.h.b16 %v44
    %v333 = vunpack.c.l.b16 %v45
    %v334 = vunpack.c.h.b16 %v45
    %v335 = vunpack.c.l.b16 %v46
    %v336 = vunpack.c.h.b16 %v46
    %v337 = vunpack.c.l.b16 %v47
    %v338 = vunpack.c.h.b16 %v47
    %v339 = vunpack.c.l.b16 %v48
    %v340 = vunpack.c.h.b16 %v48
    %v341 = vunpack.c.l.b16 %v49
    %v342 = vunpack.c.h.b16 %v49
    %v343 = vunpack.c.l.b16 %v50
    %v344 = vunpack.c.h.b16 %v50
    %v345 = vunpack.c.l.b16 %v51
    %v346 = vunpack.c.h.b16 %v51
    %v347 = vunpack.c.l.b16 %v52
    %v348 = vunpack.c.h.b16 %v52
    %v349 = vunpack.c.l.b16 %v53
    %v350 = vunpack.c.h.b16 %v53
    %v351 = vunpack.c.l.b16 %v54
    %v352 = vunpack.c.h.b16 %v54
    %v353 = vunpack.c.l.b16 %v55
    %v354 = vunpack.c.h.b16 %v55
    %v355 = vunpack.c.l.b16 %v56
    %v356 = vunpack.c.h.b16 %v56
    %v357 = vunpack.c.l.b16 %v57
    %v358 = vunpack.c.h.b16 %v57
    %v359 = vunpack.c.l.b16 %v58
    %v360 = vunpack.c.h.b16 %v58
    %v361 = vunpack.c.l.b16 %v59
    %v362 = vunpack.c.h.b16 %v59
    %v363 = vunpack.c.l.b16 %v60
    %v364 = vunpack.c.h.b16 %v60
    %v365 = vunpack.c.l.b16 %v61
    %v366 = vunpack.c.h.b16 %v61
    %v367 = vunpack.c.l.b16 %v62
    %v368 = vunpack.c.h.b16 %v62
    %v369 = vunpack.c.l.b16 %v63
    %v370 = vunpack.c.h.b16 %v63
    %v371 = vunpack.c.l.b16 %v64
    %v372 = vunpack.c.h.b16 %v64
    %v373 = vunpack.c.l.b16 %v65
    %v374 = vunpack.c.h.b16 %v65
    %v375 = vunpack.c.l.b16 %v66
    %v376 = vunpack.c.h.b16 %v66
    %v377 = vunpack.c.l.b16 %v67
    %v378 = vunpack.c.h.b16 %v67
    %v379 = vunpack.c.l.b16 %v68
    %v380 = vunpack.c.h.b16 %v68
    %v381 = vunpack.c.l.b16 %v69
    %v382 = vunpack.c.h.b16 %v69
    %v383 = vunpack.c.l.b16 %v70
    %v384 = vunpack.c.h.b16 %v70
    %v385 = vunpack.c.l.b16 %v71
    %v386 = vunpack.c.h.b16 %v71
    %v387 = vunpack.c.l.b16 %v72
    %v388 = vunpack.c.h.b16 %v72
    %v389 = vunpack.c.l.b16 %v73
    %v390 = vunpack.c.h.b16 %v73
    %v391 = vunpack.c.l.b16 %v74
    %v392 = vunpack.c.h.b16 %v74
    %v393 = vunpack.c.l.b16 %v75
    %v394 = vunpack.c.h.b16 %v75
    %v395 = vunpack.c.l.b16 %v76
    %v396 = vunpack.c.h.b16 %v76
    %v397 = vunpack.c.l.b16 %v77
    %v398 = vunpack.c.h.b16 %v77
    %v399 = vunpack.c.l.b16 %v78
    %v400 = vunpack.c.h.b16 %v78
    %v401 = vunpack.c.l.b16 %v79
    %v402 = vunpack.c.h.b16 %v79
    %v403 = vunpack.c.l.b16 %v80
    %v404 = vunpack.c.h.b16 %v80
    %v405 = vunpack.c.l.b16 %v81
    %v406 = vunpack.c.h.b16 %v81
    %v407 = vunpack.c.l.b16 %v82
    %v408 = vunpack.c.h.b16 %v82
    %v409 = vunpack.c.l.b16 %v83
    %v410 = vunpack.c.h.b16 %v83
    %v411 = vunpack.c.l.b16 %v84
    %v412 = vunpack.c.h.b16 %v84
    %v413 = vunpack.c.l.b16 %v85
    %v414 = vunpack.c.h.b16 %v85
    %v415 = vunpack.c.l.b16 %v86
    %v416 = vunpack.c.h.b16 %v86
    %v417 = vunpack.c.l.b16 %v87
    %v418 = vunpack.c.h.b16 %v87
    %v419 = vunpack.c.l.b16 %v88
    %v420 = vunpack.c.h.b16 %v88
    %v421 = vunpack.c.l.b16 %v89
    %v422 = vunpack.c.h.b16 %v89
    %v423 = vunpack.c.l.b16 %v90
    %v424 = vunpack.c.h.b16 %v90
    %v425 = vunpack.c.l.b16 %v91
    %v426 = vunpack.c.h.b16 %v91
    %v427 = vunpack.c.l.b16 %v92
    %v428 = vunpack.c.h.b16 %v92
    %v429 = vunpack.c.l.b16 %v93
    %v430 = vunpack.c.h.b16 %v93
    %v431 = vunpack.c.l.b16 %v94
    %v432 = vunpack.c.h.b16 %v94
    %v433 = vunpack.c.l.b16 %v95
    %v434 = vunpack.c.h.b16 %v95
    %v435 = vunpack.c.l.b16 %v96
    %v436 = vunpack.c.h.b16 %v96
    %v437 = vunpack.c.l.b16 %v97
    %v438 = vunpack.c.h.b16 %v97
    %v439 = vunpack.c.l.b16 %v98
    %v440 = vunpack.c.h.b16 %v98
    %v441 = vunpack.c.l.b16 %v99
    %v442 = vunpack.c.h.b16 %v99
    %v443 = vunpack.c.l.b16 %v100
    %v444 = vunpack.c.h.b16 %v100
    %v445 = vunpack.c.l.b16 %v101
    %v446 = vunpack.c.h.b16 %v101
    %v447 = vunpack.c.l.b16 %v102
    %v448 = vunpack.c.h.b16 %v102
    %v449 = vunpack.c.l.b16 %v103
    %v450 = vunpack.c.h.b16 %v103
    %v451 = vunpack.c.l.b16 %v104
    %v452 = vunpack.c.h.b16 %v104
    %v453 = vunpack.c.l.b16 %v105
    %v454 = vunpack.c.h.b16 %v105
    %v455 = vunpack.c.l.b16 %v106
    %v456 = vunpack.c.h.b16 %v106
    %v457 = vunpack.c.l.b16 %v107
    %v458 = vunpack.c.h.b16 %v107
    %v459 = vunpack.c.l.b16 %v108
    %v460 = vunpack.c.h.b16 %v108
    %v461 = vunpack.c.l.b16 %v109
    %v462 = vunpack.c.h.b16 %v109
    %v463 = vunpack.c.l.b16 %v110
    %v464 = vunpack.c.h.b16 %v110
    %v465 = vunpack.c.l.b16 %v111
    %v466 = vunpack.c.h.b16 %v111
    %v467 = vunpack.c.l.b16 %v112
    %v468 = vunpack.c.h.b16 %v112
    %v469 = vunpack.c.l.b16 %v113
    %v470 = vunpack.c.h.b16 %v113
    %v471 = vunpack.c.l.b16 %v114
    %v472 = vunpack.c.h.b16 %v114
    %v473 = vunpack.c.l.b16 %v115
    %v474 = vunpack.c.h.b16 %v115
    %v475 = vunpack.c.l.b16 %v116
    %v476 = vunpack.c.h.b16 %v116
    %v477 = vunpack.c.l.b16 %v117
    %v478 = vunpack.c.h.b16 %v117
    %v479 = vunpack.c.l.b16 %v118
    %v480 = vunpack.c.h.b16 %v118
    %v481 = vunpack.c.l.b16 %v119
    %v482 = vunpack.c.h.b16 %v119
    %v483 = vunpack.c.l.b16 %v120
    %v484 = vunpack.c.h.b16 %v120
    %v485 = vunpack.c.l.b16 %v121
    %v486 = vunpack.c.h.b16 %v121
    %v487 = vunpack.c.l.b16 %v122
    %v488 = vunpack.c.h.b16 %v122
    %v489 = vunpack.c.l.b16 %v123
    %v490 = vunpack.c.h.b16 %v123
    %v491 = vunpack.c.l.b16 %v124
    %v492 = vunpack.c.h.b16 %v124
    %v493 = vunpack.c.l.b16 %v125
    %v494 = vunpack.c.h.b16 %v125
    %v495 = vunpack.c.l.b16 %v126
    %v496 = vunpack.c.h.b16 %v126
    %v497 = vunpack.c.l.b16 %v127
    %v498 = vunpack.c.h.b16 %v127
    %v499 = vunpack.c.l.b16 %v128
    %v500 = vunpack.c.h.b16 %v128
    %v501 = vunpack.c.l.b16 %v129
    %v502 = vunpack.c.h.b16 %v129
    %v503 = vunpack.c.l.b16 %v130
    %v504 = vunpack.c.h.b16 %v130
    %v505 = vunpack.c.l.b16 %v131
    %v506 = vunpack.c.h.b16 %v131
    %v507 = vunpack.c.l.b16 %v132
    %v508 = vunpack.c.h.b16 %v132
    %v509 = vunpack.c.l.b16 %v133
    %v510 = vunpack.c.h.b16 %v133
    %v511 = vunpack.c.l.b16 %v134
    %v512 = vunpack.c.h.b16 %v134
    %v513 = vunpack.c.l.b16 %v135
    %v514 = vunpack.c.h.b16 %v135
    %v515 = vunpack.c.l.b16 %v136
    %v516 = vunpack.c.h.b16 %v136
    %v517 = vunpack.c.l.b16 %v137
    %v518 = vunpack.c.h.b16 %v137
    %v519 = vunpack.c.l.b16 %v138
    %v520 = vunpack.c.h.b16 %v138
    %v521 = vunpack.c.l.b16 %v139
    %v522 = vunpack.c.h.b16 %v139
    %v523 = vunpack.c.l.b16 %v140
    %v524 = vunpack.c.h.b16 %v140
    %v525 = vunpack.c.l.b16 %v141
    %v526 = vunpack.c.h.b16 %v141
    %v527 = vunpack.c.l.b16 %v142
    %v528 = vunpack.c.h.b16 %v142
    %v529 = vunpack.c.l.b16 %v143
    %v530 = vunpack.c.h.b16 %v143
    %v531 = vunpack.c.l.b16 %v144
    %v532 = vunpack.c.h.b16 %v144
    %v533 = vunpack.c.l.b16 %v145
    %v534 = vunpack.c.h.b16 %v145
    %v535 = vunpack.c.l.b16 %v146
    %v536 = vunpack.c.h.b16 %v146
    %v537 = vunpack.c.l.b16 %v147
    %v538 = vunpack.c.h.b16 %v147
    %v539 = vunpack.c.l.b16 %v148
    %v540 = vunpack.c.h.b16 %v148
    %v541 = vunpack.c.l.b16 %v149
    %v542 = vunpack.c.h.b16 %v149
    %v543 = vunpack.c.l.b16 %v150
    %v544 = vunpack.c.h.b16 %v150
    %v545 = vunpack.c.l.b16 %v151
    %v546 = vunpack.c.h.b16 %v151
    %v547 = vunpack.c.l.b16 %v152
    %v548 = vunpack.c.h.b16 %v152
    %v549 = vunpack.c.l.b16 %v153
    %v550 = vunpack.c.h.b16 %v153
    %v551 = vunpack.c.l.b16 %v154
    %v552 = vunpack.c.h.b16 %v154
    %v553 = vunpack.c.l.b16 %v155
    %v554 = vunpack.c.h.b16 %v155
    %v555 = vunpack.c.l.b16 %v156
    %v556 = vunpack.c.h.b16 %v156
    %v557 = vunpack.c.l.b16 %v157
    %v558 = vunpack.c.h.b16 %v157
    %v559 = vunpack.c.l.b16 %v158
    %v560 = vunpack.c.h.b16 %v158
    %v561 = vpack.c.b16 %v307, %v305
    %v562 = vpack.c.b16 %v308, %v306
    %v563 = vpack.c.b16 %v311, %v309
    %v564 = vpack.c.b16 %v312, %v310
    %v565 = vpack.c.b16 %v315, %v313
    %v566 = vpack.c.b16 %v316, %v314
    %v567 = vpack.c.b16 %v319, %v317
    %v568 = vpack.c.b16 %v320, %v318
    %v569 = vpack.c.b16 %v323, %v321
    %v570 = vpack.c.b16 %v324, %v322
    %v571 = vpack.c.b16 %v327, %v325
    %v572 = vpack.c.b16 %v328, %v326
    %v573 = vpack.c.b16 %v331, %v329
    %v574 = vpack.c.b16 %v332, %v330
    %v575 = vpack.c.b16 %v335, %v333
    %v576 = vpack.c.b16 %v336, %v334
    %v577 = vpack.c.b16 %v339, %v337
    %v578 = vpack.c.b16 %v340, %v338
    %v579 = vpack.c.b16 %v343, %v341
    %v580 = vpack.c.b16 %v344, %v342
    %v581 = vpack.c.b16 %v347, %v345
    %v582 = vpack.c.b16 %v348, %v346
    %v583 = vpack.c.b16 %v351, %v349
    %v584 = vpack.c.b16 %v352, %v350
    %v585 = vpack.c.b16 %v355, %v353
    %v586 = vpack.c.b16 %v356, %v354
    %v587 = vpack.c.b16 %v359, %v357
    %v588 = vpack.c.b16 %v360, %v358
    %v589 = vpack.c.b16 %v363, %v361
    %v590 = vpack.c.b16 %v364, %v362
    %v591 = vpack.c.b16 %v367, %v365
    %v592 = vpack.c.b16 %v368, %v366
    %v593 = vpack.c.b16 %v371, %v369
    %v594 = vpack.c.b16 %v372, %v370
    %v595 = vpack.c.b16 %v375, %v373
    %v596 = vpack.c.b16 %v376, %v374
    %v597 = vpack.c.b16 %v379, %v377
    %v598 = vpack.c.b16 %v380, %v378
    %v599 = vpack.c.b16 %v383, %v381
    %v600 = vpack.c.b16 %v384, %v382
    %v601 = vpack.c.b16 %v387, %v385
    %v602 = vpack.c.b16 %v388, %v386
    %v603 = vpack.c.b16 %v391, %v389
    %v604 = vpack.c.b16 %v392, %v390
    %v605 = vpack.c.b16 %v395, %v393
    %v606 = vpack.c.b16 %v396, %v394
    %v607 = vpack.c.b16 %v399, %v397
    %v608 = vpack.c.b16 %v400, %v398
    %v609 = vpack.c.b16 %v403, %v401
    %v610 = vpack.c.b16 %v404, %v402
    %v611 = vpack.c.b16 %v407, %v405
    %v612 = vpack.c.b16 %v408, %v406
    %v613 = vpack.c.b16 %v411, %v409
    %v614 = vpack.c.b16 %v412, %v410
    %v615 = vpack.c.b16 %v415, %v413
    %v616 = vpack.c.b16 %v416, %v414
    %v617 = vpack.c.b16 %v419, %v417
    %v618 = vpack.c.b16 %v420, %v418
    %v619 = vpack.c.b16 %v423, %v421
    %v620 = vpack.c.b16 %v424, %v422
    %v621 = vpack.c.b16 %v427, %v425
    %v622 = vpack.c.b16 %v428, %v426
    %v623 = vpack.c.b16 %v431, %v429
    %v624 = vpack.c.b16 %v432, %v430
    %v625 = vpack.c.b16 %v435, %v433
    %v626 = vpack.c.b16 %v436, %v434
    %v627 = vpack.c.b16 %v439, %v437
    %v628 = vpack.c.b16 %v440, %v438
    %v629 = vpack.c.b16 %v443, %v441
    %v630 = vpack.c.b16 %v444, %v442
    %v631 = vpack.c.b16 %v447, %v445
    %v632 = vpack.c.b16 %v448, %v446
    %v633 = vpack.c.b16 %v451, %v449
    %v634 = vpack.c.b16 %v452, %v450
    %v635 = vpack.c.b16 %v455, %v453
    %v636 = vpack.c.b16 %v456, %v454
    %v637 = vpack.c.b16 %v459, %v457
    %v638 = vpack.c.b16 %v460, %v458
    %v639 = vpack.c.b16 %v463, %v461
    %v640 = vpack.c.b16 %v464, %v462
    %v641 = vpack.c.b16 %v467, %v465
    %v642 = vpack.c.b16 %v468, %v466
    %v643 = vpack.c.b16 %v471, %v469
    %v644 = vpack.c.b16 %v472, %v470
    %v645 = vpack.c.b16 %v475, %v473
    %v646 = vpack.c.b16 %v476, %v474
    %v647 = vpack.c.b16 %v479, %v477
    %v648 = vpack.c.b16 %v480, %v478
    %v649 = vpack.c.b16 %v483, %v481
    %v650 = vpack.c.b16 %v484, %v482
    %v651 = vpack.c.b16 %v487, %v485
    %v652 = vpack.c.b16 %v488, %v486
    %v653 = vpack.c.b16 %v491, %v489
    %v654 = vpack.c.b16 %v492, %v490
    %v655 = vpack.c.b16 %v495, %v493
    %v656 = vpack.c.b16 %v496, %v494
    %v657 = vpack.c.b16 %v499, %v497
    %v658 = vpack.c.b16 %v500, %v498
    %v659 = vpack.c.b16 %v503, %v501
    %v660 = vpack.c.b16 %v504, %v502
    %v661 = vpack.c.b16 %v507, %v505
    %v662 = vpack.c.b16 %v508, %v506
    %v663 = vpack.c.b16 %v511, %v509
    %v664 = vpack.c.b16 %v512, %v510
    %v665 = vpack.c.b16 %v515, %v513
    %v666 = vpack.c.b16 %v516, %v514
    %v667 = vpack.c.b16 %v519, %v517
    %v668 = vpack.c.b16 %v520, %v518
    %v669 = vpack.c.b16 %v523, %v521
    %v670 = vpack.c.b16 %v524, %v522
    %v671 = vpack.c.b16 %v527, %v525
    %v672 = vpack.c.b16 %v528, %v526
    %v673 = vpack.c.b16 %v531, %v529
    %v674 = vpack.c.b16 %v532, %v530
    %v675 = vpack.c.b16 %v535, %v533
    %v676 = vpack.c.b16 %v536, %v534
    %v677 = vpack.c.b16 %v539, %v537
    %v678 = vpack.c.b16 %v540, %v538
    %v679 = vpack.c.b16 %v543, %v541
    %v680 = vpack.c.b16 %v544, %v542
    %v681 = vpack.c.b16 %v547, %v545
    %v682 = vpack.c.b16 %v548, %v546
    %v683 = vpack.c.b16 %v551, %v549
    %v684 = vpack.c.b16 %v552, %v550
    %v685 = vpack.c.b16 %v555, %v553
    %v686 = vpack.c.b16 %v556, %v554
    %v687 = vpack.c.b16 %v559, %v557
    %v688 = vpack.c.b16 %v560, %v558
    %817 = vmatpush.bf16.msra.mxu0 %v575
    %818 = vmatpush.bf16.msra.mxu0 %v573
    %819 = vmatpush.bf16.msra.mxu0 %v571
    %820 = vmatpush.bf16.msra.mxu0 %v569
    %821 = vmatpush.bf16.msra.mxu0 %v567
    %822 = vmatpush.bf16.msra.mxu0 %v565
    %823 = vmatpush.bf16.msra.mxu0 %v563
    %824 = vmatpush.bf16.msra.mxu0 %v561
    %825 = vmatmul.bf16.gmra.mxu0 %v161
    %v826 = vpop.f32.mrf.mxu0
    %v827 = vadd.f32 0.0, %v826
    %v828 = vpop.f32.mrf.mxu0
    %829 = vdwg.mxu0
    %830 = vmatpush.bf16.msra.mxu0 %v591
    %831 = vmatpush.bf16.msra.mxu0 %v589
    %832 = vmatpush.bf16.msra.mxu0 %v587
    %833 = vmatpush.bf16.msra.mxu0 %v585
    %834 = vmatpush.bf16.msra.mxu0 %v583
    %835 = vmatpush.bf16.msra.mxu0 %v581
    %836 = vmatpush.bf16.msra.mxu0 %v579
    %837 = vmatpush.bf16.msra.mxu0 %v577
    %838 = vmatmul.bf16.gmra.mxu0 %v162
    %v839 = vpop.f32.mrf.mxu0
    %v840 = vadd.f32 %v827, %v839
    %v841 = vpop.f32.mrf.mxu0
    %842 = vdwg.mxu0
    %843 = vmatpush.bf16.msra.mxu0 %v607
    %844 = vmatpush.bf16.msra.mxu0 %v605
    %845 = vmatpush.bf16.msra.mxu0 %v603
    %846 = vmatpush.bf16.msra.mxu0 %v601
    %847 = vmatpush.bf16.msra.mxu0 %v599
    %848 = vmatpush.bf16.msra.mxu0 %v597
    %849 = vmatpush.bf16.msra.mxu0 %v595
    %850 = vmatpush.bf16.msra.mxu0 %v593
    %851 = vmatmul.bf16.gmra.mxu0 %v163
    %v852 = vpop.f32.mrf.mxu0
    %v853 = vadd.f32 %v840, %v852
    %v854 = vpop.f32.mrf.mxu0
    %855 = vdwg.mxu0
    %856 = vmatpush.bf16.msra.mxu0 %v623
    %857 = vmatpush.bf16.msra.mxu0 %v621
    %858 = vmatpush.bf16.msra.mxu0 %v619
    %859 = vmatpush.bf16.msra.mxu0 %v617
    %860 = vmatpush.bf16.msra.mxu0 %v615
    %861 = vmatpush.bf16.msra.mxu0 %v613
    %862 = vmatpush.bf16.msra.mxu0 %v611
    %863 = vmatpush.bf16.msra.mxu0 %v609
    %864 = vmatmul.bf16.gmra.mxu0 %v164
    %v865 = vpop.f32.mrf.mxu0
    %v866 = vadd.f32 %v853, %v865
    %v867 = vpop.f32.mrf.mxu0
    %868 = vdwg.mxu0
    %869 = vmatpush.bf16.msra.mxu0 %v639
    %870 = vmatpush.bf16.msra.mxu0 %v637
    %871 = vmatpush.bf16.msra.mxu0 %v635
    %872 = vmatpush.bf16.msra.mxu0 %v633
    %873 = vmatpush.bf16.msra.mxu0 %v631
    %874 = vmatpush.bf16.msra.mxu0 %v629
    %875 = vmatpush.bf16.msra.mxu0 %v627
    %876 = vmatpush.bf16.msra.mxu0 %v625
    %877 = vmatmul.bf16.gmra.mxu0 %v165
    %v878 = vpop.f32.mrf.mxu0
    %v879 = vadd.f32 %v866, %v878
    %v880 = vpop.f32.mrf.mxu0
    %881 = vdwg.mxu0
    %882 = vmatpush.bf16.msra.mxu0 %v655
    %883 = vmatpush.bf16.msra.mxu0 %v653
    %884 = vmatpush.bf16.msra.mxu0 %v651
    %885 = vmatpush.bf16.msra.mxu0 %v649
    %886 = vmatpush.bf16.msra.mxu0 %v647
    %887 = vmatpush.bf16.msra.mxu0 %v645
    %888 = vmatpush.bf16.msra.mxu0 %v643
    %889 = vmatpush.bf16.msra.mxu0 %v641
    %890 = vmatmul.bf16.gmra.mxu0 %v166
    %v891 = vpop.f32.mrf.mxu0
    %v892 = vadd.f32 %v879, %v891
    %v893 = vpop.f32.mrf.mxu0
    %894 = vdwg.mxu0
    %895 = vmatpush.bf16.msra.mxu0 %v671
    %896 = vmatpush.bf16.msra.mxu0 %v669
    %897 = vmatpush.bf16.msra.mxu0 %v667
    %898 = vmatpush.bf16.msra.mxu0 %v665
    %899 = vmatpush.bf16.msra.mxu0 %v663
    %900 = vmatpush.bf16.msra.mxu0 %v661
    %901 = vmatpush.bf16.msra.mxu0 %v659
    %902 = vmatpush.bf16.msra.mxu0 %v657
    %903 = vmatmul.bf16.gmra.mxu0 %v167
    %v904 = vpop.f32.mrf.mxu0
    %v905 = vadd.f32 %v892, %v904
    %v906 = vpop.f32.mrf.mxu0
    %907 = vdwg.mxu0
    %908 = vmatpush.bf16.msra.mxu0 %v687
    %909 = vmatpush.bf16.msra.mxu0 %v685
    %910 = vmatpush.bf16.msra.mxu0 %v683
    %911 = vmatpush.bf16.msra.mxu0 %v681
    %912 = vmatpush.bf16.msra.mxu0 %v679
    %913 = vmatpush.bf16.msra.mxu0 %v677
    %914 = vmatpush.bf16.msra.mxu0 %v675
    %915 = vmatpush.bf16.msra.mxu0 %v673
    %916 = vmatmul.bf16.gmra.mxu0 %v168
    %v917 = vpop.f32.mrf.mxu0
    %v918 = vadd.f32 %v905, %v917
    %v919 = vpop.f32.mrf.mxu0
    %920 = vdwg.mxu0
    %921 = vmatpush.bf16.msra.mxu0 %v576
    %922 = vmatpush.bf16.msra.mxu0 %v574
    %923 = vmatpush.bf16.msra.mxu0 %v572
    %924 = vmatpush.bf16.msra.mxu0 %v570
    %925 = vmatpush.bf16.msra.mxu0 %v568
    %926 = vmatpush.bf16.msra.mxu0 %v566
    %927 = vmatpush.bf16.msra.mxu0 %v564
    %928 = vmatpush.bf16.msra.mxu0 %v562
    %929 = vmatmul.bf16.gmra.mxu0 %v161
    %v930 = vpop.f32.mrf.mxu0
    %v931 = vadd.f32 0.0, %v930
    %v932 = vpop.f32.mrf.mxu0
    %933 = vdwg.mxu0
    %934 = vmatpush.bf16.msra.mxu0 %v592
    %935 = vmatpush.bf16.msra.mxu0 %v590
    %936 = vmatpush.bf16.msra.mxu0 %v588
    %937 = vmatpush.bf16.msra.mxu0 %v586
    %938 = vmatpush.bf16.msra.mxu0 %v584
    %939 = vmatpush.bf16.msra.mxu0 %v582
    %940 = vmatpush.bf16.msra.mxu0 %v580
    %941 = vmatpush.bf16.msra.mxu0 %v578
    %942 = vmatmul.bf16.gmra.mxu0 %v162
    %v943 = vpop.f32.mrf.mxu0
    %v944 = vadd.f32 %v931, %v943
    %v945 = vpop.f32.mrf.mxu0
    %946 = vdwg.mxu0
    %947 = vmatpush.bf16.msra.mxu0 %v608
    %948 = vmatpush.bf16.msra.mxu0 %v606
    %949 = vmatpush.bf16.msra.mxu0 %v604
    %950 = vmatpush.bf16.msra.mxu0 %v602
    %951 = vmatpush.bf16.msra.mxu0 %v600
    %952 = vmatpush.bf16.msra.mxu0 %v598
    %953 = vmatpush.bf16.msra.mxu0 %v596
    %954 = vmatpush.bf16.msra.mxu0 %v594
    %955 = vmatmul.bf16.gmra.mxu0 %v163
    %v956 = vpop.f32.mrf.mxu0
    %v957 = vadd.f32 %v944, %v956
    %v958 = vpop.f32.mrf.mxu0
    %959 = vdwg.mxu0
    %960 = vmatpush.bf16.msra.mxu0 %v624
    %961 = vmatpush.bf16.msra.mxu0 %v622
    %962 = vmatpush.bf16.msra.mxu0 %v620
    %963 = vmatpush.bf16.msra.mxu0 %v618
    %964 = vmatpush.bf16.msra.mxu0 %v616
    %965 = vmatpush.bf16.msra.mxu0 %v614
    %966 = vmatpush.bf16.msra.mxu0 %v612
    %967 = vmatpush.bf16.msra.mxu0 %v610
    %968 = vmatmul.bf16.gmra.mxu0 %v164
    %v969 = vpop.f32.mrf.mxu0
    %v970 = vadd.f32 %v957, %v969
    %v971 = vpop.f32.mrf.mxu0
    %972 = vdwg.mxu0
    %973 = vmatpush.bf16.msra.mxu0 %v640
    %974 = vmatpush.bf16.msra.mxu0 %v638
    %975 = vmatpush.bf16.msra.mxu0 %v636
    %976 = vmatpush.bf16.msra.mxu0 %v634
    %977 = vmatpush.bf16.msra.mxu0 %v632
    %978 = vmatpush.bf16.msra.mxu0 %v630
    %979 = vmatpush.bf16.msra.mxu0 %v628
    %980 = vmatpush.bf16.msra.mxu0 %v626
    %981 = vmatmul.bf16.gmra.mxu0 %v165
    %v982 = vpop.f32.mrf.mxu0
    %v983 = vadd.f32 %v970, %v982
    %v984 = vpop.f32.mrf.mxu0
    %985 = vdwg.mxu0
    %986 = vmatpush.bf16.msra.mxu0 %v656
    %987 = vmatpush.bf16.msra.mxu0 %v654
    %988 = vmatpush.bf16.msra.mxu0 %v652
    %989 = vmatpush.bf16.msra.mxu0 %v650
    %990 = vmatpush.bf16.msra.mxu0 %v648
    %991 = vmatpush.bf16.msra.mxu0 %v646
    %992 = vmatpush.bf16.msra.mxu0 %v644
    %993 = vmatpush.bf16.msra.mxu0 %v642
    %994 = vmatmul.bf16.gmra.mxu0 %v166
    %v995 = vpop.f32.mrf.mxu0
    %v996 = vadd.f32 %v983, %v995
    %v997 = vpop.f32.mrf.mxu0
    %998 = vdwg.mxu0
    %999 = vmatpush.bf16.msra.mxu0 %v672
    %1000 = vmatpush.bf16.msra.mxu0 %v670
    %1001 = vmatpush.bf16.msra.mxu0 %v668
    %1002 = vmatpush.bf16.msra.mxu0 %v666
    %1003 = vmatpush.bf16.msra.mxu0 %v664
    %1004 = vmatpush.bf16.msra.mxu0 %v662
    %1005 = vmatpush.bf16.msra.mxu0 %v660
    %1006 = vmatpush.bf16.msra.mxu0 %v658
    %1007 = vmatmul.bf16.gmra.mxu0 %v167
    %v1008 = vpop.f32.mrf.mxu0
    %v1009 = vadd.f32 %v996, %v1008
    %v1010 = vpop.f32.mrf.mxu0
    %1011 = vdwg.mxu0
    %1012 = vmatpush.bf16.msra.mxu0 %v688
    %1013 = vmatpush.bf16.msra.mxu0 %v686
    %1014 = vmatpush.bf16.msra.mxu0 %v684
    %1015 = vmatpush.bf16.msra.mxu0 %v682
    %1016 = vmatpush.bf16.msra.mxu0 %v680
    %1017 = vmatpush.bf16.msra.mxu0 %v678
    %1018 = vmatpush.bf16.msra.mxu0 %v676
    %1019 = vmatpush.bf16.msra.mxu0 %v674
    %1020 = vmatmul.bf16.gmra.mxu0 %v168
    %v1021 = vpop.f32.mrf.mxu0
    %v1022 = vadd.f32 %v1009, %v1021
    %v1023 = vpop.f32.mrf.mxu0
    %1024 = vdwg.mxu0
    %v1027 = vrot.slane %v1022, 6
    %vm1028 = vcmask 1041408
    %v1029 = vsel %vm1028, %v918, %v1027
    %v1031 = vadd.f32 %v29, %v1029
    %vm1032 = vcmask 470018
    %vm1033 = vmor %vm1032, %vm1028
    %1034 = vst.msk [vmem:[#allocation2] sm:$0xf] %vm1033, %v1031
    // Predicated region
    $region22: #{tpu_custom_call.1} parent=1 // pred_check
      %p1035 = pneg %p21
    $region23: #{tpu_custom_call.1} parent=1 // pred_check_branch
      %1037 = sbr.rel (%p1035) target = $region25
    $region24: #{tpu_custom_call.1} parent=1 // pred_region
      %v1038 = vld [vmem:[#allocation2] sm:$0xf]
      %v1039 = vld [vmem:[%s2] sm:$0x3]
      %v1041 = vperm.slane %v1039, 0
      %v1042 = vperm.slane %v1039, 1
      %v1043 = vrot.slane %v1042, 6
      %v1044 = vsel %vm1028, %v1041, %v1043
      %v1046 = vadd.f32 %v1038, %v1044
      %1047 = vst.msk [vmem:[#allocation2] sm:$0xf] %vm1033, %v1046
      %1049 = vst [vmem:[#allocation1] ss:$4 sm:$0xff] %v1046
      %v1050 = vld.sshfl [vmem:[#allocation1] sm:$0xff pattern:$0x73625140]
      %v1051 = vld.sshfl [vmem:[#allocation1 + $0x8] sm:$0xff pattern:$0x73625140]
      %v1054 = vsel %vm1028, %v1050, -inf
      %vm1055 = vcmask 467968
      %v1056 = vsel %vm1055, %v1051, -inf
      %v1057 = vmax.f32 %v1054, %v1056
      %1058 = vmax.xlane.f32.xlu0 %v1057
      %v1059 = vpop.xlane.xlu0 %1058
      %v1062 = vunpack.c.l.s4 269488144
      %v1063 = vunpack.c.0.s8 %v1062
      %v1064 = vperm.slane %v1059, %v1063
      %v1066 = vsub.f32 %v1046, %v1064
      %v1067 = vmul.f32 %v1066, 1.442695
      %v1068 = vpow.pop %v1067
      %1070 = vst [vmem:[#allocation1] ss:$4 sm:$0xff] %v1068
      %v1071 = vld.sshfl [vmem:[#allocation1] sm:$0xff pattern:$0x73625140]
      %v1072 = vld.sshfl [vmem:[#allocation1 + $0x8] sm:$0xff pattern:$0x73625140]
      %v1075 = vsel %vm1028, %v1071, 0.0
      %v1076 = vsel %vm1055, %v1072, 0.0
      %v1077 = vadd.f32 %v1075, %v1076
      %1078 = vadd.xlane.f32.xlu0 %v1077
      %v1079 = vpop.xlane.xlu0 %1078
      %v1080 = vlog2.pop %v1079
      %v1081 = vmul.f32 %v1080, 0.6931472
      %v1082 = vadd.f32 %v1081, %v1059
      %v1083 = vld [vmem:[%s3] sm:$0x3]
      %v1084 = vlaneseq
      %v1085 = vand.u32 %v1084, 127
      %v1086 = vadd.s32 %v1085, 128
      %1087 = vset.pattern.permute.xlu0 0
      %1088 = vperm.xlu0 %1087, %v1083
      %v1089 = vpop.permute.xlu0 %1088
      %vm1090 = vcmp.eq.s32.totalorder %v1085, %v1089
      %vm1091 = vcmp.eq.s32.totalorder %v1086, %v1089
      %1092 = vst [vmem:[#allocation1] ss:$4 sm:$0xff] %v1046
      %v1093 = vld.sshfl [vmem:[#allocation1] sm:$0xff pattern:$0x73625140]
      %v1094 = vld.sshfl [vmem:[#allocation1 + $0x8] sm:$0xff pattern:$0x73625140]
      %v1097 = vsel %vm1090, %v1093, 0.0
      %v1098 = vsel %vm1091, %v1094, 0.0
      %v1099 = vsel %vm1028, %v1097, 0.0
      %v1100 = vsel %vm1055, %v1098, 0.0
      %v1101 = vadd.f32 %v1099, %v1100
      %1102 = vadd.xlane.f32.xlu0 %v1101
      %v1103 = vpop.xlane.xlu0 %1102
      %v1104 = vsub.f32 %v1082, %v1103
      %vm1105 = vcmask 1024
      %1106 = vst.msk [vmem:[%s5] sm:$0x3] %vm1105, %v1104
      %vm1107 = vcmp.ge.f32.partialorder %v1046, %v1064
      %v1108 = vrot.slane %v1086, 6
      %v1109 = vsel %vm1028, %v1085, %v1108
      %v1110 = vsel %vm1107, %v1109, 186
      %1111 = vst [vmem:[#allocation1] ss:$4 sm:$0xff] %v1110
      %v1112 = vld.sshfl [vmem:[#allocation1] sm:$0xff pattern:$0x73625140]
      %v1113 = vld.sshfl [vmem:[#allocation1 + $0x8] sm:$0xff pattern:$0x73625140]
      %v1114 = vsel %vm1028, %v1112, 2147483647
      %v1115 = vsel %vm1055, %v1113, 2147483647
      %vm1116 = vcmp.lt.s32.totalorder %v1114, %v1115
      %v1117 = vsel %vm1116, %v1114, %v1115
      %v1118 = vand.u32 %v1117, 65535
      %v1119 = vshra.s32 %v1117, 16
      %v1120 = vcvt.s32.f32 %v1118
      %v1121 = vcvt.s32.f32 %v1119
      %1122 = vmin.xlane.f32.xlu0 %v1121
      %v1123 = vpop.xlane.xlu0 %1122
      %vm1124 = vcmp.eq.f32.partialorder %v1121, %v1123
      %v1125 = vsel %vm1124, %v1120, inf
      %1126 = vmin.xlane.f32.xlu0 %v1125
      %v1127 = vpop.xlane.xlu0 %1126
      %v1128 = vcvt.f32.s32 %v1127
      %v1129 = vcvt.f32.s32 %v1123
      %v1130 = vshll.u32 %v1129, 16
      %v1131 = vadd.s32 %v1130, %v1128
      %vm1132 = vcmp.eq.s32.totalorder %v1131, %v1083
      %v1133 = vsel %vm1132, 1, 0
      %v1134 = vcvt.s32.f32 %v1133
      %1135 = vst.msk [vmem:[%s6] sm:$0x3] %vm1105, %v1134
    $region25: #{tpu_custom_call.1} parent=1 // pred_fallthru
      _
    // Predicated region
    $region26: #{tpu_custom_call.1} parent=1 // pred_check
      _
    $region27: #{tpu_custom_call.1} parent=1 // pred_check_branch
      %1137 = sbr.rel (0) target = $region29
    $region28: #{tpu_custom_call.1} parent=1 // pred_region
      %1139 = vsyncadd [#allocation3], 0
      %s1141 = sshll.u32 [#allocation2], 4
      %s1142 = int_to_ptr.vmem [resolvable:$true] %s1141
      %s1143 = sshll.u32 %s4, 4
      %s1144 = int_to_ptr.hbm [resolvable:$true] %s1143
      %1146 = dma.vmem_to_hbm [thread:$0]  %s1142, 64, %s1144, [#allocation3]
    $region29: #{tpu_custom_call.1} parent=1 // pred_fallthru
      _
    // Predicated region
    $region30: #{tpu_custom_call.1} parent=1 // pred_check
      _
    $region31: #{tpu_custom_call.1} parent=1 // pred_check_branch
      %1148 = sbr.rel (0) target = $region33
    $region32: #{tpu_custom_call.1} parent=1 // pred_region
      _
    $region33: #{tpu_custom_call.1} parent=1 // pred_fallthru
      _
    // Predicated region
    $region34: #{tpu_custom_call.1} parent=1 // pred_check
      _
    $region35: #{tpu_custom_call.1} parent=1 // pred_check_branch
      %1150 = sbr.rel (0) target = $region37
    $region36: #{tpu_custom_call.1} parent=1 // pred_region
      _
    $region37: #{tpu_custom_call.1} parent=1 // pred_fallthru
      _
    // Predicated region
    $region38: #{tpu_custom_call.1} parent=1 // pred_check
      _
    $region39: #{tpu_custom_call.1} parent=1 // pred_check_branch
      %1152 = sbr.rel (0) target = $region41
    $region40: #{tpu_custom_call.1} parent=1 // pred_region
      %1154 = dma.done [#allocation3], 64
    $region41: #{tpu_custom_call.1} parent=1 // pred_fallthru
      _
    // Predicated region
    $region42: #{tpu_custom_call.1} parent=1 // pred_check
      _
    $region43: #{tpu_custom_call.1} parent=1 // pred_check_branch
      %1156 = sbr.rel (0) target = $region45
    $region44: #{tpu_custom_call.1} parent=1 // pred_region
      _
    $region45: #{tpu_custom_call.1} parent=1 // pred_fallthru
      _
    // Predicated region
    $region46: #{tpu_custom_call.1} parent=1 // pred_check
      _
    $region47: #{tpu_custom_call.1} parent=1 // pred_check_branch
      %1158 = sbr.rel (0) target = $region49
    $region48: #{tpu_custom_call.1} parent=1 // pred_region
      _
    $region49: #{tpu_custom_call.1} parent=1 // pred_fallthru
      _
    %1159 = vsyncpa [#allocation3], 1

</llo_original>
